<compile_context>
chip_gen: v7x
topology: tpu7x:2x2x1
jax: 0.10.0
libtpu: 0.0.40
codegen_flags: <defaults>
</compile_context>

<pallas_src>
import functools

import jax
import jax.numpy as jnp
from jax.experimental import pallas as pl
from jax.experimental.pallas import tpu as pltpu

H1, H2, H3 = 512, 128, 64
HEAD_PAD = 128                                  # lane-dense width for layer-3 / fused head
W_PACK_ROWS = H1 + HEAD_PAD + HEAD_PAD          # 768 rows: [W2 ; W3pad ; Whead]
B_PACK_LANES = H1 + H2 + HEAD_PAD + HEAD_PAD    # 896 lanes: [b1 | b2 | b3pad | bhead]


def _policy_kernel(x_ref, w1_ref, wp_ref, bp_ref, out_ref, *, action_dims):
    x = x_ref[...].astype(jnp.float32)

    # Packed weight slab (all offsets (8,128)-tile aligned -> zero-cost views).
    w2 = wp_ref[pl.ds(0, H1), :]                          # (512, 128)
    w3 = wp_ref[pl.ds(H1, HEAD_PAD), :]                   # (128, 128) cols 64: are zero
    wh = wp_ref[pl.ds(H1 + HEAD_PAD, HEAD_PAD), :]        # (128, 128) [Wm | Ws | 0]; rows 64: zero

    # Packed bias slab (lane offsets 0 / 512 / 640 / 768 -> all 128-aligned).
    b1 = bp_ref[:, pl.ds(0, H1)]                          # (1, 512)
    b2 = bp_ref[:, pl.ds(H1, H2)]                         # (1, 128)
    b3 = bp_ref[:, pl.ds(H1 + H2, HEAD_PAD)]              # (1, 128) lanes 64: are zero
    bh = bp_ref[:, pl.ds(H1 + H2 + HEAD_PAD, HEAD_PAD)]   # (1, 128) [bm | bs | 0]

    # Shared trunk: Linear + Hardtanh x3 (MXU matmul + VPU clip).
    h = jnp.clip(jnp.dot(x, w1_ref[...], preferred_element_type=jnp.float32) + b1, -1.0, 1.0)
    h = jnp.clip(jnp.dot(h, w2, preferred_element_type=jnp.float32) + b2, -1.0, 1.0)
    h = jnp.clip(jnp.dot(h, w3, preferred_element_type=jnp.float32) + b3, -1.0, 1.0)
    # h lanes [64,128) are exactly zero (zero W3 cols / zero b3 pad, hardtanh(0)=0).

    # Fused heads: lanes [0,A) = mean, [A,2A) = stddev pre-activation, rest zero-cols.
    z = jnp.dot(h, wh, preferred_element_type=jnp.float32) + bh   # (TB, 128)

    # Softplus only on the stddev lanes; stable form of log(1 + exp(z)).
    lane = jax.lax.broadcasted_iota(jnp.int32, z.shape, 1)
    is_std = (lane >= action_dims) & (lane < 2 * action_dims)
    softplus = jnp.maximum(z, 0.0) + jnp.log1p(jnp.exp(-jnp.abs(z)))
    out_ref[...] = jnp.where(is_std, softplus, z)


def _round_up(n, m):
    return ((n + m - 1) // m) * m


def pack_params(p):
    """One-time packing of per-layer params into the kernel's 3-buffer layout."""
    A = p["wm"].shape[1]
    assert 2 * A <= HEAD_PAD, "action_space_dims too large for fused 128-lane head"

    w3p = jnp.pad(p["w3"], ((0, 0), (0, HEAD_PAD - H3)))                 # (128, 128)
    wh = jnp.concatenate([p["wm"], p["ws"]], axis=1)                     # (64, 2A)
    wh = jnp.pad(wh, ((0, HEAD_PAD - H3), (0, HEAD_PAD - 2 * A)))        # (128, 128)
    w_pack = jnp.concatenate([p["w2"], w3p, wh], axis=0)                 # (768, 128)

    b3p = jnp.pad(p["b3"], ((0, 0), (0, HEAD_PAD - H3)))                 # (1, 128)
    bh = jnp.concatenate([p["bm"], p["bs"]], axis=1)                     # (1, 2A)
    bh = jnp.pad(bh, ((0, 0), (0, HEAD_PAD - 2 * A)))                    # (1, 128)
    b_pack = jnp.concatenate([p["b1"], p["b2"], b3p, bh], axis=1)        # (1, 896)

    return dict(w1=p["w1"], w_pack=w_pack, b_pack=b_pack)


@functools.partial(jax.jit, static_argnames=("action_dims",))
def policy_network_forward(x, packed, action_dims):
    """mean, std = policy(x); x is (B, obs_dim)."""
    x = x.astype(jnp.float32)
    B, obs = x.shape

    # Batch tiling: small B -> single block; large B -> 512-row tiles,
    # 'parallel' for megacore sharding, weights stay VMEM-resident
    # (constant index_maps -> they are DMA'd once and reused).
    TB = min(512, _round_up(B, 8))
    Bp = _round_up(B, TB)
    if Bp != B:
        x = jnp.pad(x, ((0, Bp - B), (0, 0)))

    kernel = functools.partial(_policy_kernel, action_dims=action_dims)
    out = pl.pallas_call(
        kernel,
        out_shape=jax.ShapeDtypeStruct((Bp, HEAD_PAD), jnp.float32),
        grid_spec=pltpu.PrefetchScalarGridSpec(
            num_scalar_prefetch=0,
            grid=(Bp // TB,),
            in_specs=[
                pl.BlockSpec((TB, obs), lambda i: (i, 0)),                   # activations
                pl.BlockSpec((obs, H1), lambda i: (0, 0)),                   # W1 (resident)
                pl.BlockSpec((W_PACK_ROWS, HEAD_PAD), lambda i: (0, 0)),     # packed weights
                pl.BlockSpec((1, B_PACK_LANES), lambda i: (0, 0)),           # packed biases
            ],
            out_specs=pl.BlockSpec((TB, HEAD_PAD), lambda i: (i, 0)),
        ),
        compiler_params=pltpu.CompilerParams(
            dimension_semantics=("parallel",)),
    )(x, packed["w1"], packed["w_pack"], packed["b_pack"])

    mean = out[:B, :action_dims]
    std = out[:B, action_dims:2 * action_dims]
    return mean, std


def init_params(key, obs_space_dims, action_space_dims):
    """PyTorch-Linear-style init: U(-1/sqrt(fan_in), 1/sqrt(fan_in)); W stored (in, out)."""
    def linear(key, fan_in, fan_out):
        kw, kb = jax.random.split(key)
        bound = 1.0 / jnp.sqrt(jnp.float32(fan_in))
        w = jax.random.uniform(kw, (fan_in, fan_out), jnp.float32, -bound, bound)
        b = jax.random.uniform(kb, (1, fan_out), jnp.float32, -bound, bound)
        return w, b

    k1, k2, k3, km, ks = jax.random.split(key, 5)
    w1, b1 = linear(k1, obs_space_dims, H1)
    w2, b2 = linear(k2, H1, H2)
    w3, b3 = linear(k3, H2, H3)
    wm, bm = linear(km, H3, action_space_dims)
    ws, bs = linear(ks, H3, action_space_dims)
    return dict(w1=w1, b1=b1, w2=w2, b2=b2, w3=w3, b3=b3,
                wm=wm, bm=bm, ws=ws, bs=bs)


def _reference_forward(x, p):
    """Plain-JAX reference (naive torch formula) for correctness check."""
    h = jnp.clip(x @ p["w1"] + p["b1"], -1.0, 1.0)
    h = jnp.clip(h @ p["w2"] + p["b2"], -1.0, 1.0)
    h = jnp.clip(h @ p["w3"] + p["b3"], -1.0, 1.0)
    mean = h @ p["wm"] + p["bm"]
    std = jnp.log(1.0 + jnp.exp(h @ p["ws"] + p["bs"]))
    return mean, std


if __name__ == "__main__":
    obs_space_dims = 16
    action_space_dims = 4
    batch = 8

    key = jax.random.PRNGKey(0)
    kx, kp = jax.random.split(key)

    x = jax.random.normal(kx, (batch, obs_space_dims), dtype=jnp.float32)
    params = init_params(kp, obs_space_dims, action_space_dims)
    packed = pack_params(params)   # one-time packing; reuse across calls

    mean, std = policy_network_forward(x, packed, action_space_dims)
    jax.block_until_ready((mean, std))

    ref_mean, ref_std = _reference_forward(x, params)
    assert mean.shape == (batch, action_space_dims)
    assert std.shape == (batch, action_space_dims)
    assert jnp.allclose(mean, ref_mean, atol=1e-4, rtol=1e-4)
    assert jnp.allclose(std, ref_std, atol=1e-4, rtol=1e-4)
    assert bool(jnp.all(std > 0.0))

    print("KERNEL_OK")
</pallas_src>

<mosaic_0001>
module attributes {stable_mosaic.version = 11 : i64} {
  func.func @_policy_kernel(%arg0: i32, %arg1: memref<8x16xf32, #tpu.memory_space<vmem>>, %arg2: memref<16x512xf32, #tpu.memory_space<vmem>>, %arg3: memref<768x128xf32, #tpu.memory_space<vmem>>, %arg4: memref<1x896xf32, #tpu.memory_space<vmem>>, %arg5: memref<8x128xf32, #tpu.memory_space<vmem>>) attributes {dimension_semantics = [#tpu.dimension_semantics<parallel>], iteration_bounds = array<i64: 1>, scalar_prefetch = 0 : i64, scratch_operands = 0 : i64, tpu.core_type = #tpu.core_type<tc>, window_params = [{transform_indices = @transform_0, window_bounds = array<i64: 8, 16>}, {pipeline_mode = #tpu.pipeline_mode<synchronous>, transform_indices = @transform_1, window_bounds = array<i64: 16, 512>}, {pipeline_mode = #tpu.pipeline_mode<synchronous>, transform_indices = @transform_2, window_bounds = array<i64: 768, 128>}, {pipeline_mode = #tpu.pipeline_mode<synchronous>, transform_indices = @transform_3, window_bounds = array<i64: 1, 896>}, {transform_indices = @transform_4, window_bounds = array<i64: 8, 128>}]} {
    %c0 = arith.constant 0 : index
    %c0_0 = arith.constant 0 : index
    %0 = vector.load %arg1[%c0, %c0_0] : memref<8x16xf32, #tpu.memory_space<vmem>>, vector<8x16xf32>
    %c0_1 = arith.constant 0 : index
    %c0_2 = arith.constant 0 : index
    %1 = vector.load %arg3[%c0_1, %c0_2] : memref<768x128xf32, #tpu.memory_space<vmem>>, vector<512x128xf32>
    %c512 = arith.constant 512 : index
    %c0_3 = arith.constant 0 : index
    %2 = vector.load %arg3[%c512, %c0_3] : memref<768x128xf32, #tpu.memory_space<vmem>>, vector<128x128xf32>
    %c640 = arith.constant 640 : index
    %c0_4 = arith.constant 0 : index
    %3 = vector.load %arg3[%c640, %c0_4] : memref<768x128xf32, #tpu.memory_space<vmem>>, vector<128x128xf32>
    %c0_5 = arith.constant 0 : index
    %c0_6 = arith.constant 0 : index
    %4 = vector.load %arg4[%c0_5, %c0_6] : memref<1x896xf32, #tpu.memory_space<vmem>>, vector<1x512xf32>
    %c0_7 = arith.constant 0 : index
    %c512_8 = arith.constant 512 : index
    %5 = vector.load %arg4[%c0_7, %c512_8] : memref<1x896xf32, #tpu.memory_space<vmem>>, vector<1x128xf32>
    %c0_9 = arith.constant 0 : index
    %c640_10 = arith.constant 640 : index
    %6 = vector.load %arg4[%c0_9, %c640_10] : memref<1x896xf32, #tpu.memory_space<vmem>>, vector<1x128xf32>
    %c0_11 = arith.constant 0 : index
    %c768 = arith.constant 768 : index
    %7 = vector.load %arg4[%c0_11, %c768] : memref<1x896xf32, #tpu.memory_space<vmem>>, vector<1x128xf32>
    %c0_12 = arith.constant 0 : index
    %c0_13 = arith.constant 0 : index
    %8 = vector.load %arg2[%c0_12, %c0_13] : memref<16x512xf32, #tpu.memory_space<vmem>>, vector<16x512xf32>
    %cst = arith.constant dense<0.000000e+00> : vector<8x512xf32>
    %9 = tpu.matmul %0, %8, %cst {dimension_numbers = #tpu.dot_dimension_numbers<[1], [0], [0], [1], [0, 0, 1, 1], [], []>} : vector<8x16xf32>, vector<16x512xf32>, vector<8x512xf32> -> vector<8x512xf32>
    %10 = vector.broadcast %4 : vector<1x512xf32> to vector<8x512xf32>
    %11 = arith.addf %9, %10 : vector<8x512xf32>
    %cst_14 = arith.constant -1.000000e+00 : f32
    %cst_15 = arith.constant 1.000000e+00 : f32
    %12 = vector.broadcast %cst_14 : f32 to vector<8x512xf32>
    %13 = arith.maximumf %12, %11 : vector<8x512xf32>
    %14 = vector.broadcast %cst_15 : f32 to vector<8x512xf32>
    %15 = arith.minimumf %14, %13 : vector<8x512xf32>
    %cst_16 = arith.constant dense<0.000000e+00> : vector<8x128xf32>
    %16 = tpu.matmul %15, %1, %cst_16 {dimension_numbers = #tpu.dot_dimension_numbers<[1], [0], [0], [1], [0, 0, 1, 1], [], []>} : vector<8x512xf32>, vector<512x128xf32>, vector<8x128xf32> -> vector<8x128xf32>
    %17 = vector.broadcast %5 : vector<1x128xf32> to vector<8x128xf32>
    %18 = arith.addf %16, %17 : vector<8x128xf32>
    %cst_17 = arith.constant -1.000000e+00 : f32
    %cst_18 = arith.constant 1.000000e+00 : f32
    %19 = vector.broadcast %cst_17 : f32 to vector<8x128xf32>
    %20 = arith.maximumf %19, %18 : vector<8x128xf32>
    %21 = vector.broadcast %cst_18 : f32 to vector<8x128xf32>
    %22 = arith.minimumf %21, %20 : vector<8x128xf32>
    %cst_19 = arith.constant dense<0.000000e+00> : vector<8x128xf32>
    %23 = tpu.matmul %22, %2, %cst_19 {dimension_numbers = #tpu.dot_dimension_numbers<[1], [0], [0], [1], [0, 0, 1, 1], [], []>} : vector<8x128xf32>, vector<128x128xf32>, vector<8x128xf32> -> vector<8x128xf32>
    %24 = vector.broadcast %6 : vector<1x128xf32> to vector<8x128xf32>
    %25 = arith.addf %23, %24 : vector<8x128xf32>
    %cst_20 = arith.constant -1.000000e+00 : f32
    %cst_21 = arith.constant 1.000000e+00 : f32
    %26 = vector.broadcast %cst_20 : f32 to vector<8x128xf32>
    %27 = arith.maximumf %26, %25 : vector<8x128xf32>
    %28 = vector.broadcast %cst_21 : f32 to vector<8x128xf32>
    %29 = arith.minimumf %28, %27 : vector<8x128xf32>
    %cst_22 = arith.constant dense<0.000000e+00> : vector<8x128xf32>
    %30 = tpu.matmul %29, %3, %cst_22 {dimension_numbers = #tpu.dot_dimension_numbers<[1], [0], [0], [1], [0, 0, 1, 1], [], []>} : vector<8x128xf32>, vector<128x128xf32>, vector<8x128xf32> -> vector<8x128xf32>
    %31 = vector.broadcast %7 : vector<1x128xf32> to vector<8x128xf32>
    %32 = arith.addf %30, %31 : vector<8x128xf32>
    %33 = tpu.iota {dimensions = array<i32: 1>} : vector<8x128xi32>
    %c4_i32 = arith.constant 4 : i32
    %34 = vector.broadcast %c4_i32 : i32 to vector<8x128xi32>
    %35 = arith.cmpi sge, %33, %34 : vector<8x128xi32>
    %c8_i32 = arith.constant 8 : i32
    %36 = vector.broadcast %c8_i32 : i32 to vector<8x128xi32>
    %37 = arith.cmpi slt, %33, %36 : vector<8x128xi32>
    %38 = arith.andi %35, %37 : vector<8x128xi1>
    %cst_23 = arith.constant 0.000000e+00 : f32
    %39 = vector.broadcast %cst_23 : f32 to vector<8x128xf32>
    %40 = arith.maximumf %32, %39 : vector<8x128xf32>
    %41 = math.absf %32 : vector<8x128xf32>
    %cst_24 = arith.constant 0.000000e+00 : f32
    %42 = vector.broadcast %cst_24 : f32 to vector<8x128xf32>
    %43 = arith.subf %42, %41 : vector<8x128xf32>
    %44 = math.exp %43 : vector<8x128xf32>
    %45 = math.log1p %44 : vector<8x128xf32>
    %46 = arith.addf %40, %45 : vector<8x128xf32>
    %47 = arith.select %38, %46, %32 : vector<8x128xi1>, vector<8x128xf32>
    %c0_25 = arith.constant 0 : index
    %c0_26 = arith.constant 0 : index
    %48 = vector.load %arg5[%c0_25, %c0_26] : memref<8x128xf32, #tpu.memory_space<vmem>>, vector<8x128xf32>
    tpu.vector_store %arg5[%c0_25, %c0_26], %47 {strides = array<i32>} : memref<8x128xf32, #tpu.memory_space<vmem>>, vector<8x128xf32>,
    return
  }
  func.func @transform_0(%arg0: i32) -> (i32, i32) {
    %c0_i32 = arith.constant 0 : i32
    %c0_i32_0 = arith.constant 0 : i32
    return %arg0, %c0_i32 : i32, i32
  }
  func.func @transform_1(%arg0: i32) -> (i32, i32) {
    %c0_i32 = arith.constant 0 : i32
    %c0_i32_0 = arith.constant 0 : i32
    %c0_i32_1 = arith.constant 0 : i32
    return %c0_i32, %c0_i32_0 : i32, i32
  }
  func.func @transform_2(%arg0: i32) -> (i32, i32) {
    %c0_i32 = arith.constant 0 : i32
    %c0_i32_0 = arith.constant 0 : i32
    %c0_i32_1 = arith.constant 0 : i32
    return %c0_i32, %c0_i32_0 : i32, i32
  }
  func.func @transform_3(%arg0: i32) -> (i32, i32) {
    %c0_i32 = arith.constant 0 : i32
    %c0_i32_0 = arith.constant 0 : i32
    %c0_i32_1 = arith.constant 0 : i32
    return %c0_i32, %c0_i32_0 : i32, i32
  }
  func.func @transform_4(%arg0: i32) -> (i32, i32) {
    %c0_i32 = arith.constant 0 : i32
    %c0_i32_0 = arith.constant 0 : i32
    return %arg0, %c0_i32 : i32, i32
  }
}

</mosaic_0001>

<llo_original>
// kernel: policy_network_forward.1
$region0: #{policy_network_forward.1}
  #allocation0 [shape = 'u32[]', space=smem, size = 0x4, offset = 0x4, fixed_abs, tag = 'smem constant byte address 0x4 - core index']
  #allocation1 [shape = 'u32[144,128]{1,0:T(1,128)}', space=vmem, size = 0x12000, scoped, tag = 'internal scratch']
  %s0 = inlined_call_operand.hbm [shape: f32[8,16], index: 0, kind: input, shape index: {}]
  %s1 = inlined_call_operand.hbm [shape: f32[16,512], index: 1, kind: input, shape index: {}]
  %s2 = inlined_call_operand.hbm [shape: f32[768,128], index: 2, kind: input, shape index: {}]
  %s3 = inlined_call_operand.hbm [shape: f32[1,896], index: 3, kind: input, shape index: {}]
  %s4 = inlined_call_operand.vmem [shape: f32[8,128], index: 4, kind: output, shape index: {}]
  %s5 = sld [smem:[#allocation0]]
  $region42: #{policy_network_forward.1} parent=0
    _
  %s7 = ssub.s32 1, %s5
  %s8 = scalar_select 0, %s7, %s5
  $region1: #{policy_network_forward.1} parent=0
    #allocation2 [shape = 'u8[4096]{0}', space=vmem, size = 0x1000, scoped, tag = 'input window, operand 0, single buffered']
    #allocation3 [shape = 's32[1]{0}', space=sflag, size = 0x4, scoped, tag = 'scoped memory for policy_network_forward.1']
    #allocation4 [shape = 'u8[32768]{0}', space=vmem, size = 0x8000, scoped, tag = 'input window, operand 1, single buffered']
    #allocation5 [shape = 's32[1]{0}', space=sflag, size = 0x4, scoped, tag = 'scoped memory for policy_network_forward.1']
    #allocation6 [shape = 'u8[393216]{0}', space=vmem, size = 0x60000, scoped, tag = 'input window, operand 2, single buffered']
    #allocation7 [shape = 'u8[3584]{0}', space=vmem, size = 0x1000, scoped, tag = 'input window, operand 3, single buffered']
    #allocation8 [shape = 's32[1]{0}', space=sflag, size = 0x4, scoped, tag = 'scoped memory for policy_network_forward.1']
    %9 = vsyncpa [#allocation3], 0
    %10 = vsyncpa [#allocation5], 0
    %11 = vsyncpa [#allocation8], 0
    // Predicated region
    $region2: #{policy_network_forward.1} parent=1 // pred_check
      _
    $region3: #{policy_network_forward.1} parent=1 // pred_check_branch
      %13 = sbr.rel (0) target = $region5
    $region4: #{policy_network_forward.1} parent=1 // pred_region
      %s15 = ssub.s32 128, 128
      %16 = vsyncadd [#allocation3], %s15
      %s18 = sshll.u32 [#allocation2], 4
      %s19 = int_to_ptr.vmem [resolvable:$true] %s18
      %21 = dma.hbm_to_vmem [thread:$0]  %s0, 128, %s19, [#allocation3]
    $region5: #{policy_network_forward.1} parent=1 // pred_fallthru
      _
    // Predicated region
    $region6: #{policy_network_forward.1} parent=1 // pred_check
      _
    $region7: #{policy_network_forward.1} parent=1 // pred_check_branch
      %23 = sbr.rel (0) target = $region9
    $region8: #{policy_network_forward.1} parent=1 // pred_region
      %s25 = ssub.s32 1024, 1024
      %26 = vsyncadd [#allocation5], %s25
      %s27 = sshll.u32 [#allocation4], 4
      %s28 = int_to_ptr.vmem [resolvable:$true] %s27
      %33 = dma.hbm_to_vmem [thread:$0]  %s1, 1024, %s28, [#allocation5], 512, 512, 32
    $region9: #{policy_network_forward.1} parent=1 // pred_fallthru
      _
    // Predicated region
    $region10: #{policy_network_forward.1} parent=1 // pred_check
      _
    $region11: #{policy_network_forward.1} parent=1 // pred_check_branch
      %35 = sbr.rel (0) target = $region13
    $region12: #{policy_network_forward.1} parent=1 // pred_region
      %s37 = ssub.s32 12288, 12288
      %38 = vsyncadd [#allocation5], %s37
      %s39 = sshll.u32 [#allocation6], 4
      %s40 = int_to_ptr.vmem [resolvable:$true] %s39
      %45 = dma.hbm_to_vmem [thread:$0]  %s2, 12288, %s40, [#allocation5], 128, 128, 8
    $region13: #{policy_network_forward.1} parent=1 // pred_fallthru
      _
    // Predicated region
    $region14: #{policy_network_forward.1} parent=1 // pred_check
      _
    $region15: #{policy_network_forward.1} parent=1 // pred_check_branch
      %47 = sbr.rel (0) target = $region17
    $region16: #{policy_network_forward.1} parent=1 // pred_region
      %s49 = ssub.s32 112, 112
      %50 = vsyncadd [#allocation8], %s49
      %s52 = sshll.u32 [#allocation7], 4
      %s53 = int_to_ptr.vmem [resolvable:$true] %s52
      %55 = dma.hbm_to_vmem [thread:$0]  %s3, 112, %s53, [#allocation8]
    $region17: #{policy_network_forward.1} parent=1 // pred_fallthru
      _
    // Predicated region
    $region18: #{policy_network_forward.1} parent=1 // pred_check
      _
    $region19: #{policy_network_forward.1} parent=1 // pred_check_branch
      %57 = sbr.rel (0) target = $region21
    $region20: #{policy_network_forward.1} parent=1 // pred_region
      %58 = dma.done [#allocation3], 128
    $region21: #{policy_network_forward.1} parent=1 // pred_fallthru
      _
    // Predicated region
    $region22: #{policy_network_forward.1} parent=1 // pred_check
      _
    $region23: #{policy_network_forward.1} parent=1 // pred_check_branch
      %60 = sbr.rel (0) target = $region25
    $region24: #{policy_network_forward.1} parent=1 // pred_region
      %61 = dma.done [#allocation5], 1024
    $region25: #{policy_network_forward.1} parent=1 // pred_fallthru
      _
    // Predicated region
    $region26: #{policy_network_forward.1} parent=1 // pred_check
      _
    $region27: #{policy_network_forward.1} parent=1 // pred_check_branch
      %63 = sbr.rel (0) target = $region29
    $region28: #{policy_network_forward.1} parent=1 // pred_region
      %64 = dma.done [#allocation5], 12288
    $region29: #{policy_network_forward.1} parent=1 // pred_fallthru
      _
    // Predicated region
    $region30: #{policy_network_forward.1} parent=1 // pred_check
      _
    $region31: #{policy_network_forward.1} parent=1 // pred_check_branch
      %66 = sbr.rel (0) target = $region33
    $region32: #{policy_network_forward.1} parent=1 // pred_region
      %67 = dma.done [#allocation8], 112
    $region33: #{policy_network_forward.1} parent=1 // pred_fallthru
      _
    %v68 = vld [vmem:[#allocation2] sm:$0xff]
    %v69 = vld [vmem:[#allocation6] sm:$0xff]
    %v70 = vld [vmem:[#allocation6 + $0x8] sm:$0xff]
    %v71 = vld [vmem:[#allocation6 + $0x10] sm:$0xff]
    %v72 = vld [vmem:[#allocation6 + $0x18] sm:$0xff]
    %v73 = vld [vmem:[#allocation6 + $0x20] sm:$0xff]
    %v74 = vld [vmem:[#allocation6 + $0x28] sm:$0xff]
    %v75 = vld [vmem:[#allocation6 + $0x30] sm:$0xff]
    %v76 = vld [vmem:[#allocation6 + $0x38] sm:$0xff]
    %v77 = vld [vmem:[#allocation6 + $0x40] sm:$0xff]
    %v78 = vld [vmem:[#allocation6 + $0x48] sm:$0xff]
    %v79 = vld [vmem:[#allocation6 + $0x50] sm:$0xff]
    %v80 = vld [vmem:[#allocation6 + $0x58] sm:$0xff]
    %v81 = vld [vmem:[#allocation6 + $0x60] sm:$0xff]
    %v82 = vld [vmem:[#allocation6 + $0x68] sm:$0xff]
    %v83 = vld [vmem:[#allocation6 + $0x70] sm:$0xff]
    %v84 = vld [vmem:[#allocation6 + $0x78] sm:$0xff]
    %v85 = vld [vmem:[#allocation6 + $0x80] sm:$0xff]
    %v86 = vld [vmem:[#allocation6 + $0x88] sm:$0xff]
    %v87 = vld [vmem:[#allocation6 + $0x90] sm:$0xff]
    %v88 = vld [vmem:[#allocation6 + $0x98] sm:$0xff]
    %v89 = vld [vmem:[#allocation6 + $0xa0] sm:$0xff]
    %v90 = vld [vmem:[#allocation6 + $0xa8] sm:$0xff]
    %v91 = vld [vmem:[#allocation6 + $0xb0] sm:$0xff]
    %v92 = vld [vmem:[#allocation6 + $0xb8] sm:$0xff]
    %v93 = vld [vmem:[#allocation6 + $0xc0] sm:$0xff]
    %v94 = vld [vmem:[#allocation6 + $0xc8] sm:$0xff]
    %v95 = vld [vmem:[#allocation6 + $0xd0] sm:$0xff]
    %v96 = vld [vmem:[#allocation6 + $0xd8] sm:$0xff]
    %v97 = vld [vmem:[#allocation6 + $0xe0] sm:$0xff]
    %v98 = vld [vmem:[#allocation6 + $0xe8] sm:$0xff]
    %v99 = vld [vmem:[#allocation6 + $0xf0] sm:$0xff]
    %v100 = vld [vmem:[#allocation6 + $0xf8] sm:$0xff]
    %v101 = vld [vmem:[#allocation6 + $0x100] sm:$0xff]
    %v102 = vld [vmem:[#allocation6 + $0x108] sm:$0xff]
    %v103 = vld [vmem:[#allocation6 + $0x110] sm:$0xff]
    %v104 = vld [vmem:[#allocation6 + $0x118] sm:$0xff]
    %v105 = vld [vmem:[#allocation6 + $0x120] sm:$0xff]
    %v106 = vld [vmem:[#allocation6 + $0x128] sm:$0xff]
    %v107 = vld [vmem:[#allocation6 + $0x130] sm:$0xff]
    %v108 = vld [vmem:[#allocation6 + $0x138] sm:$0xff]
    %v109 = vld [vmem:[#allocation6 + $0x140] sm:$0xff]
    %v110 = vld [vmem:[#allocation6 + $0x148] sm:$0xff]
    %v111 = vld [vmem:[#allocation6 + $0x150] sm:$0xff]
    %v112 = vld [vmem:[#allocation6 + $0x158] sm:$0xff]
    %v113 = vld [vmem:[#allocation6 + $0x160] sm:$0xff]
    %v114 = vld [vmem:[#allocation6 + $0x168] sm:$0xff]
    %v115 = vld [vmem:[#allocation6 + $0x170] sm:$0xff]
    %v116 = vld [vmem:[#allocation6 + $0x178] sm:$0xff]
    %v117 = vld [vmem:[#allocation6 + $0x180] sm:$0xff]
    %v118 = vld [vmem:[#allocation6 + $0x188] sm:$0xff]
    %v119 = vld [vmem:[#allocation6 + $0x190] sm:$0xff]
    %v120 = vld [vmem:[#allocation6 + $0x198] sm:$0xff]
    %v121 = vld [vmem:[#allocation6 + $0x1a0] sm:$0xff]
    %v122 = vld [vmem:[#allocation6 + $0x1a8] sm:$0xff]
    %v123 = vld [vmem:[#allocation6 + $0x1b0] sm:$0xff]
    %v124 = vld [vmem:[#allocation6 + $0x1b8] sm:$0xff]
    %v125 = vld [vmem:[#allocation6 + $0x1c0] sm:$0xff]
    %v126 = vld [vmem:[#allocation6 + $0x1c8] sm:$0xff]
    %v127 = vld [vmem:[#allocation6 + $0x1d0] sm:$0xff]
    %v128 = vld [vmem:[#allocation6 + $0x1d8] sm:$0xff]
    %v129 = vld [vmem:[#allocation6 + $0x1e0] sm:$0xff]
    %v130 = vld [vmem:[#allocation6 + $0x1e8] sm:$0xff]
    %v131 = vld [vmem:[#allocation6 + $0x1f0] sm:$0xff]
    %v132 = vld [vmem:[#allocation6 + $0x1f8] sm:$0xff]
    %v133 = vld [vmem:[#allocation6 + $0x200] sm:$0xff]
    %v134 = vld [vmem:[#allocation6 + $0x208] sm:$0xff]
    %v135 = vld [vmem:[#allocation6 + $0x210] sm:$0xff]
    %v136 = vld [vmem:[#allocation6 + $0x218] sm:$0xff]
    %v137 = vld [vmem:[#allocation6 + $0x220] sm:$0xff]
    %v138 = vld [vmem:[#allocation6 + $0x228] sm:$0xff]
    %v139 = vld [vmem:[#allocation6 + $0x230] sm:$0xff]
    %v140 = vld [vmem:[#allocation6 + $0x238] sm:$0xff]
    %v141 = vld [vmem:[#allocation6 + $0x240] sm:$0xff]
    %v142 = vld [vmem:[#allocation6 + $0x248] sm:$0xff]
    %v143 = vld [vmem:[#allocation6 + $0x250] sm:$0xff]
    %v144 = vld [vmem:[#allocation6 + $0x258] sm:$0xff]
    %v145 = vld [vmem:[#allocation6 + $0x260] sm:$0xff]
    %v146 = vld [vmem:[#allocation6 + $0x268] sm:$0xff]
    %v147 = vld [vmem:[#allocation6 + $0x270] sm:$0xff]
    %v148 = vld [vmem:[#allocation6 + $0x278] sm:$0xff]
    %v149 = vld [vmem:[#allocation6 + $0x280] sm:$0xff]
    %v150 = vld [vmem:[#allocation6 + $0x288] sm:$0xff]
    %v151 = vld [vmem:[#allocation6 + $0x290] sm:$0xff]
    %v152 = vld [vmem:[#allocation6 + $0x298] sm:$0xff]
    %v153 = vld [vmem:[#allocation6 + $0x2a0] sm:$0xff]
    %v154 = vld [vmem:[#allocation6 + $0x2a8] sm:$0xff]
    %v155 = vld [vmem:[#allocation6 + $0x2b0] sm:$0xff]
    %v156 = vld [vmem:[#allocation6 + $0x2b8] sm:$0xff]
    %v157 = vld [vmem:[#allocation6 + $0x2c0] sm:$0xff]
    %v158 = vld [vmem:[#allocation6 + $0x2c8] sm:$0xff]
    %v159 = vld [vmem:[#allocation6 + $0x2d0] sm:$0xff]
    %v160 = vld [vmem:[#allocation6 + $0x2d8] sm:$0xff]
    %v161 = vld [vmem:[#allocation6 + $0x2e0] sm:$0xff]
    %v162 = vld [vmem:[#allocation6 + $0x2e8] sm:$0xff]
    %v163 = vld [vmem:[#allocation6 + $0x2f0] sm:$0xff]
    %v164 = vld [vmem:[#allocation6 + $0x2f8] sm:$0xff]
    %v165 = vld [vmem:[#allocation7] sm:$0xf]
    %v166 = vld [vmem:[#allocation7 + $0x4] sm:$0x1]
    %v167 = vld [vmem:[#allocation7 + $0x5] sm:$0x1]
    %v168 = vld [vmem:[#allocation7 + $0x6] sm:$0x1]
    %v169 = vld [vmem:[#allocation4] sm:$0xff]
    %v170 = vld [vmem:[#allocation4 + $0x8] sm:$0xff]
    %v171 = vld [vmem:[#allocation4 + $0x10] sm:$0xff]
    %v172 = vld [vmem:[#allocation4 + $0x18] sm:$0xff]
    %v173 = vld [vmem:[#allocation4 + $0x20] sm:$0xff]
    %v174 = vld [vmem:[#allocation4 + $0x28] sm:$0xff]
    %v175 = vld [vmem:[#allocation4 + $0x30] sm:$0xff]
    %v176 = vld [vmem:[#allocation4 + $0x38] sm:$0xff]
    %v178 = vlaneseq
    %v179 = vshrl.u32 %v178, 7
    %v180 = vsub.s32 0, %v179
    %v181 = vrot.slane %v165, %v180
    %v182 = vlaneseq
    %v183 = vshrl.u32 %v182, 7
    %v184 = vsub.s32 1, %v183
    %v185 = vrot.slane %v165, %v184
    %v186 = vlaneseq
    %v187 = vshrl.u32 %v186, 7
    %v188 = vsub.s32 2, %v187
    %v189 = vrot.slane %v165, %v188
    %v190 = vlaneseq
    %v191 = vshrl.u32 %v190, 7
    %v192 = vsub.s32 3, %v191
    %v193 = vrot.slane %v165, %v192
    %vm198 = vcmask 130048
    %v200 = vsel %vm198, %v68, 0
    %202 = vmatprep.subr.mxu0 %v170
    %203 = vmatpush1.msra.mxu0 %v169
    %204 = vmatprep.subr.mxu0 %v174
    %205 = vmatpush1.msra.mxu0 %v173
    %206 = vmatprep.subr.mxu0 0.0
    %207 = vmatpush1.msra.mxu0 0.0
    %208 = vmatprep.subr.mxu0 0.0
    %209 = vmatpush1.msra.mxu0 0.0
    %210 = vmatprep.subr.mxu0 0.0
    %211 = vmatpush1.msra.mxu0 0.0
    %212 = vmatprep.subr.mxu0 0.0
    %213 = vmatpush1.msra.mxu0 0.0
    %214 = vmatprep.subr.mxu0 0.0
    %215 = vmatpush1.msra.mxu0 0.0
    %216 = vmatprep.subr.mxu0 0.0
    %217 = vmatpush1.msra.mxu0 0.0
    %218 = vmatprep.subr.mxu0 0.0
    %219 = vmatpush1.msra.mxu0 0.0
    %220 = vmatprep.subr.mxu0 0.0
    %221 = vmatpush1.msra.mxu0 0.0
    %222 = vmatprep.subr.mxu0 0.0
    %223 = vmatpush1.msra.mxu0 0.0
    %224 = vmatprep.subr.mxu0 0.0
    %225 = vmatpush1.msra.mxu0 0.0
    %226 = vmatprep.subr.mxu0 0.0
    %227 = vmatpush1.msra.mxu0 0.0
    %228 = vmatprep.subr.mxu0 0.0
    %229 = vmatpush1.msra.mxu0 0.0
    %230 = vmatprep.subr.mxu0 0.0
    %231 = vmatpush1.msra.mxu0 0.0
    %232 = vmatprep.subr.mxu0 0.0
    %233 = vmatpush1.msra.mxu0 0.0
    %234 = vmatprep.subr.mxu0 0.0
    %235 = vmatpush1.msra.mxu0 0.0
    %236 = vmatprep.subr.mxu0 0.0
    %237 = vmatpush1.msra.mxu0 0.0
    %238 = vmatprep.subr.mxu0 0.0
    %239 = vmatpush1.msra.mxu0 0.0
    %240 = vmatprep.subr.mxu0 0.0
    %241 = vmatpush1.msra.mxu0 0.0
    %242 = vmatprep.subr.mxu0 0.0
    %243 = vmatpush1.msra.mxu0 0.0
    %244 = vmatprep.subr.mxu0 0.0
    %245 = vmatpush1.msra.mxu0 0.0
    %246 = vmatprep.subr.mxu0 0.0
    %247 = vmatpush1.msra.mxu0 0.0
    %248 = vmatprep.subr.mxu0 0.0
    %249 = vmatpush1.msra.mxu0 0.0
    %250 = vmatprep.subr.mxu0 0.0
    %251 = vmatpush1.msra.mxu0 0.0
    %252 = vmatprep.subr.mxu0 0.0
    %253 = vmatpush1.msra.mxu0 0.0
    %254 = vmatprep.subr.mxu0 0.0
    %255 = vmatpush1.msra.mxu0 0.0
    %256 = vmatprep.subr.mxu0 0.0
    %257 = vmatpush1.msra.mxu0 0.0
    %258 = vmatprep.subr.mxu0 0.0
    %259 = vmatpush1.msra.mxu0 0.0
    %260 = vmatprep.subr.mxu0 0.0
    %261 = vmatpush1.msra.mxu0 0.0
    %262 = vmatprep.subr.mxu0 0.0
    %263 = vmatpush1.msra.mxu0 0.0
    %264 = vmatprep.subr.mxu0 0.0
    %265 = vmatpush1.msra.mxu0 0.0
    %266 = vmatprep.mubr.f32.mxu0 0.0
    %267 = vmatmul.mubr.f32.gmra.mrb[0].mxu0 %v200
    %v268 = vpop.f32.mrb[0].mxu0
    %v269 = vadd.f32 %v181, %v268
    %v270 = vpop.f32.mrb[0].mxu0
    %v271 = vadd.f32 %v185, %v270
    %272 = vdwg.mxu0
    %273 = vmatprep.subr.mxu0 %v172
    %274 = vmatpush1.msra.mxu0 %v171
    %275 = vmatprep.subr.mxu0 %v176
    %276 = vmatpush1.msra.mxu0 %v175
    %277 = vmatprep.subr.mxu0 0.0
    %278 = vmatpush1.msra.mxu0 0.0
    %279 = vmatprep.subr.mxu0 0.0
    %280 = vmatpush1.msra.mxu0 0.0
    %281 = vmatprep.subr.mxu0 0.0
    %282 = vmatpush1.msra.mxu0 0.0
    %283 = vmatprep.subr.mxu0 0.0
    %284 = vmatpush1.msra.mxu0 0.0
    %285 = vmatprep.subr.mxu0 0.0
    %286 = vmatpush1.msra.mxu0 0.0
    %287 = vmatprep.subr.mxu0 0.0
    %288 = vmatpush1.msra.mxu0 0.0
    %289 = vmatprep.subr.mxu0 0.0
    %290 = vmatpush1.msra.mxu0 0.0
    %291 = vmatprep.subr.mxu0 0.0
    %292 = vmatpush1.msra.mxu0 0.0
    %293 = vmatprep.subr.mxu0 0.0
    %294 = vmatpush1.msra.mxu0 0.0
    %295 = vmatprep.subr.mxu0 0.0
    %296 = vmatpush1.msra.mxu0 0.0
    %297 = vmatprep.subr.mxu0 0.0
    %298 = vmatpush1.msra.mxu0 0.0
    %299 = vmatprep.subr.mxu0 0.0
    %300 = vmatpush1.msra.mxu0 0.0
    %301 = vmatprep.subr.mxu0 0.0
    %302 = vmatpush1.msra.mxu0 0.0
    %303 = vmatprep.subr.mxu0 0.0
    %304 = vmatpush1.msra.mxu0 0.0
    %305 = vmatprep.subr.mxu0 0.0
    %306 = vmatpush1.msra.mxu0 0.0
    %307 = vmatprep.subr.mxu0 0.0
    %308 = vmatpush1.msra.mxu0 0.0
    %309 = vmatprep.subr.mxu0 0.0
    %310 = vmatpush1.msra.mxu0 0.0
    %311 = vmatprep.subr.mxu0 0.0
    %312 = vmatpush1.msra.mxu0 0.0
    %313 = vmatprep.subr.mxu0 0.0
    %314 = vmatpush1.msra.mxu0 0.0
    %315 = vmatprep.subr.mxu0 0.0
    %316 = vmatpush1.msra.mxu0 0.0
    %317 = vmatprep.subr.mxu0 0.0
    %318 = vmatpush1.msra.mxu0 0.0
    %319 = vmatprep.subr.mxu0 0.0
    %320 = vmatpush1.msra.mxu0 0.0
    %321 = vmatprep.subr.mxu0 0.0
    %322 = vmatpush1.msra.mxu0 0.0
    %323 = vmatprep.subr.mxu0 0.0
    %324 = vmatpush1.msra.mxu0 0.0
    %325 = vmatprep.subr.mxu0 0.0
    %326 = vmatpush1.msra.mxu0 0.0
    %327 = vmatprep.subr.mxu0 0.0
    %328 = vmatpush1.msra.mxu0 0.0
    %329 = vmatprep.subr.mxu0 0.0
    %330 = vmatpush1.msra.mxu0 0.0
    %331 = vmatprep.subr.mxu0 0.0
    %332 = vmatpush1.msra.mxu0 0.0
    %333 = vmatprep.subr.mxu0 0.0
    %334 = vmatpush1.msra.mxu0 0.0
    %335 = vmatprep.subr.mxu0 0.0
    %336 = vmatpush1.msra.mxu0 0.0
    %337 = vmatprep.mubr.f32.mxu0 0.0
    %338 = vmatmul.mubr.f32.gmra.mrb[0].mxu0 %v200
    %v339 = vpop.f32.mrb[0].mxu0
    %v340 = vadd.f32 %v189, %v339
    %v341 = vpop.f32.mrb[0].mxu0
    %v342 = vadd.f32 %v193, %v341
    %343 = vdwg.mxu0
    %v344 = vmax.f32 %v269, -1.0
    %v345 = vmax.f32 %v271, -1.0
    %v346 = vmax.f32 %v340, -1.0
    %v347 = vmax.f32 %v342, -1.0
    %v348 = vmin.f32 %v344, 1.0
    %v349 = vmin.f32 %v345, 1.0
    %v350 = vmin.f32 %v346, 1.0
    %v351 = vmin.f32 %v347, 1.0
    %v353 = vlaneseq
    %v354 = vshrl.u32 %v353, 7
    %v355 = vsub.s32 0, %v354
    %v356 = vrot.slane %v166, %v355
    %358 = vmatprep.subr.mxu0 0.0
    %359 = vmatpush1.msra.mxu0 %v69
    %360 = vmatprep.subr.mxu0 0.0
    %361 = vmatpush1.msra.mxu0 %v70
    %362 = vmatprep.subr.mxu0 0.0
    %363 = vmatpush1.msra.mxu0 %v71
    %364 = vmatprep.subr.mxu0 0.0
    %365 = vmatpush1.msra.mxu0 %v72
    %366 = vmatprep.subr.mxu0 0.0
    %367 = vmatpush1.msra.mxu0 %v73
    %368 = vmatprep.subr.mxu0 0.0
    %369 = vmatpush1.msra.mxu0 %v74
    %370 = vmatprep.subr.mxu0 0.0
    %371 = vmatpush1.msra.mxu0 %v75
    %372 = vmatprep.subr.mxu0 0.0
    %373 = vmatpush1.msra.mxu0 %v76
    %374 = vmatprep.subr.mxu0 0.0
    %375 = vmatpush1.msra.mxu0 %v77
    %376 = vmatprep.subr.mxu0 0.0
    %377 = vmatpush1.msra.mxu0 %v78
    %378 = vmatprep.subr.mxu0 0.0
    %379 = vmatpush1.msra.mxu0 %v79
    %380 = vmatprep.subr.mxu0 0.0
    %381 = vmatpush1.msra.mxu0 %v80
    %382 = vmatprep.subr.mxu0 0.0
    %383 = vmatpush1.msra.mxu0 %v81
    %384 = vmatprep.subr.mxu0 0.0
    %385 = vmatpush1.msra.mxu0 %v82
    %386 = vmatprep.subr.mxu0 0.0
    %387 = vmatpush1.msra.mxu0 %v83
    %388 = vmatprep.subr.mxu0 0.0
    %389 = vmatpush1.msra.mxu0 %v84
    %390 = vmatprep.subr.mxu0 0.0
    %391 = vmatpush1.msra.mxu0 %v85
    %392 = vmatprep.subr.mxu0 0.0
    %393 = vmatpush1.msra.mxu0 %v86
    %394 = vmatprep.subr.mxu0 0.0
    %395 = vmatpush1.msra.mxu0 %v87
    %396 = vmatprep.subr.mxu0 0.0
    %397 = vmatpush1.msra.mxu0 %v88
    %398 = vmatprep.subr.mxu0 0.0
    %399 = vmatpush1.msra.mxu0 %v89
    %400 = vmatprep.subr.mxu0 0.0
    %401 = vmatpush1.msra.mxu0 %v90
    %402 = vmatprep.subr.mxu0 0.0
    %403 = vmatpush1.msra.mxu0 %v91
    %404 = vmatprep.subr.mxu0 0.0
    %405 = vmatpush1.msra.mxu0 %v92
    %406 = vmatprep.subr.mxu0 0.0
    %407 = vmatpush1.msra.mxu0 %v93
    %408 = vmatprep.subr.mxu0 0.0
    %409 = vmatpush1.msra.mxu0 %v94
    %410 = vmatprep.subr.mxu0 0.0
    %411 = vmatpush1.msra.mxu0 %v95
    %412 = vmatprep.subr.mxu0 0.0
    %413 = vmatpush1.msra.mxu0 %v96
    %414 = vmatprep.subr.mxu0 0.0
    %415 = vmatpush1.msra.mxu0 %v97
    %416 = vmatprep.subr.mxu0 0.0
    %417 = vmatpush1.msra.mxu0 %v98
    %418 = vmatprep.subr.mxu0 0.0
    %419 = vmatpush1.msra.mxu0 %v99
    %420 = vmatprep.subr.mxu0 0.0
    %421 = vmatpush1.msra.mxu0 %v100
    %422 = vmatprep.mubr.f32.mxu0 %v349
    %423 = vmatmul.mubr.f32.gmra.mrb[0].mxu0 %v348
    %v424 = vpop.f32.mrb[0].mxu0
    %v425 = vadd.f32 %v356, %v424
    %v426 = vpop.f32.mrb[0].mxu0
    %427 = vdwg.mxu0
    %428 = vmatprep.subr.mxu0 0.0
    %429 = vmatpush1.msra.mxu0 %v101
    %430 = vmatprep.subr.mxu0 0.0
    %431 = vmatpush1.msra.mxu0 %v102
    %432 = vmatprep.subr.mxu0 0.0
    %433 = vmatpush1.msra.mxu0 %v103
    %434 = vmatprep.subr.mxu0 0.0
    %435 = vmatpush1.msra.mxu0 %v104
    %436 = vmatprep.subr.mxu0 0.0
    %437 = vmatpush1.msra.mxu0 %v105
    %438 = vmatprep.subr.mxu0 0.0
    %439 = vmatpush1.msra.mxu0 %v106
    %440 = vmatprep.subr.mxu0 0.0
    %441 = vmatpush1.msra.mxu0 %v107
    %442 = vmatprep.subr.mxu0 0.0
    %443 = vmatpush1.msra.mxu0 %v108
    %444 = vmatprep.subr.mxu0 0.0
    %445 = vmatpush1.msra.mxu0 %v109
    %446 = vmatprep.subr.mxu0 0.0
    %447 = vmatpush1.msra.mxu0 %v110
    %448 = vmatprep.subr.mxu0 0.0
    %449 = vmatpush1.msra.mxu0 %v111
    %450 = vmatprep.subr.mxu0 0.0
    %451 = vmatpush1.msra.mxu0 %v112
    %452 = vmatprep.subr.mxu0 0.0
    %453 = vmatpush1.msra.mxu0 %v113
    %454 = vmatprep.subr.mxu0 0.0
    %455 = vmatpush1.msra.mxu0 %v114
    %456 = vmatprep.subr.mxu0 0.0
    %457 = vmatpush1.msra.mxu0 %v115
    %458 = vmatprep.subr.mxu0 0.0
    %459 = vmatpush1.msra.mxu0 %v116
    %460 = vmatprep.subr.mxu0 0.0
    %461 = vmatpush1.msra.mxu0 %v117
    %462 = vmatprep.subr.mxu0 0.0
    %463 = vmatpush1.msra.mxu0 %v118
    %464 = vmatprep.subr.mxu0 0.0
    %465 = vmatpush1.msra.mxu0 %v119
    %466 = vmatprep.subr.mxu0 0.0
    %467 = vmatpush1.msra.mxu0 %v120
    %468 = vmatprep.subr.mxu0 0.0
    %469 = vmatpush1.msra.mxu0 %v121
    %470 = vmatprep.subr.mxu0 0.0
    %471 = vmatpush1.msra.mxu0 %v122
    %472 = vmatprep.subr.mxu0 0.0
    %473 = vmatpush1.msra.mxu0 %v123
    %474 = vmatprep.subr.mxu0 0.0
    %475 = vmatpush1.msra.mxu0 %v124
    %476 = vmatprep.subr.mxu0 0.0
    %477 = vmatpush1.msra.mxu0 %v125
    %478 = vmatprep.subr.mxu0 0.0
    %479 = vmatpush1.msra.mxu0 %v126
    %480 = vmatprep.subr.mxu0 0.0
    %481 = vmatpush1.msra.mxu0 %v127
    %482 = vmatprep.subr.mxu0 0.0
    %483 = vmatpush1.msra.mxu0 %v128
    %484 = vmatprep.subr.mxu0 0.0
    %485 = vmatpush1.msra.mxu0 %v129
    %486 = vmatprep.subr.mxu0 0.0
    %487 = vmatpush1.msra.mxu0 %v130
    %488 = vmatprep.subr.mxu0 0.0
    %489 = vmatpush1.msra.mxu0 %v131
    %490 = vmatprep.subr.mxu0 0.0
    %491 = vmatpush1.msra.mxu0 %v132
    %492 = vmatprep.mubr.f32.mxu0 %v351
    %493 = vmatmul.mubr.f32.gmra.mrb[0].mxu0 %v350
    %v494 = vpop.f32.mrb[0].mxu0
    %v495 = vadd.f32 %v425, %v494
    %v496 = vpop.f32.mrb[0].mxu0
    %497 = vdwg.mxu0
    %v498 = vmax.f32 %v495, -1.0
    %v499 = vmin.f32 %v498, 1.0
    %v501 = vlaneseq
    %v502 = vshrl.u32 %v501, 7
    %v503 = vsub.s32 0, %v502
    %v504 = vrot.slane %v167, %v503
    %506 = vmatprep.subr.mxu0 0.0
    %507 = vmatpush1.msra.mxu0 %v133
    %508 = vmatprep.subr.mxu0 0.0
    %509 = vmatpush1.msra.mxu0 %v134
    %510 = vmatprep.subr.mxu0 0.0
    %511 = vmatpush1.msra.mxu0 %v135
    %512 = vmatprep.subr.mxu0 0.0
    %513 = vmatpush1.msra.mxu0 %v136
    %514 = vmatprep.subr.mxu0 0.0
    %515 = vmatpush1.msra.mxu0 %v137
    %516 = vmatprep.subr.mxu0 0.0
    %517 = vmatpush1.msra.mxu0 %v138
    %518 = vmatprep.subr.mxu0 0.0
    %519 = vmatpush1.msra.mxu0 %v139
    %520 = vmatprep.subr.mxu0 0.0
    %521 = vmatpush1.msra.mxu0 %v140
    %522 = vmatprep.subr.mxu0 0.0
    %523 = vmatpush1.msra.mxu0 %v141
    %524 = vmatprep.subr.mxu0 0.0
    %525 = vmatpush1.msra.mxu0 %v142
    %526 = vmatprep.subr.mxu0 0.0
    %527 = vmatpush1.msra.mxu0 %v143
    %528 = vmatprep.subr.mxu0 0.0
    %529 = vmatpush1.msra.mxu0 %v144
    %530 = vmatprep.subr.mxu0 0.0
    %531 = vmatpush1.msra.mxu0 %v145
    %532 = vmatprep.subr.mxu0 0.0
    %533 = vmatpush1.msra.mxu0 %v146
    %534 = vmatprep.subr.mxu0 0.0
    %535 = vmatpush1.msra.mxu0 %v147
    %536 = vmatprep.subr.mxu0 0.0
    %537 = vmatpush1.msra.mxu0 %v148
    %538 = vmatprep.subr.mxu0 0.0
    %539 = vmatpush1.msra.mxu0 0.0
    %540 = vmatprep.subr.mxu0 0.0
    %541 = vmatpush1.msra.mxu0 0.0
    %542 = vmatprep.subr.mxu0 0.0
    %543 = vmatpush1.msra.mxu0 0.0
    %544 = vmatprep.subr.mxu0 0.0
    %545 = vmatpush1.msra.mxu0 0.0
    %546 = vmatprep.subr.mxu0 0.0
    %547 = vmatpush1.msra.mxu0 0.0
    %548 = vmatprep.subr.mxu0 0.0
    %549 = vmatpush1.msra.mxu0 0.0
    %550 = vmatprep.subr.mxu0 0.0
    %551 = vmatpush1.msra.mxu0 0.0
    %552 = vmatprep.subr.mxu0 0.0
    %553 = vmatpush1.msra.mxu0 0.0
    %554 = vmatprep.subr.mxu0 0.0
    %555 = vmatpush1.msra.mxu0 0.0
    %556 = vmatprep.subr.mxu0 0.0
    %557 = vmatpush1.msra.mxu0 0.0
    %558 = vmatprep.subr.mxu0 0.0
    %559 = vmatpush1.msra.mxu0 0.0
    %560 = vmatprep.subr.mxu0 0.0
    %561 = vmatpush1.msra.mxu0 0.0
    %562 = vmatprep.subr.mxu0 0.0
    %563 = vmatpush1.msra.mxu0 0.0
    %564 = vmatprep.subr.mxu0 0.0
    %565 = vmatpush1.msra.mxu0 0.0
    %566 = vmatprep.subr.mxu0 0.0
    %567 = vmatpush1.msra.mxu0 0.0
    %568 = vmatprep.subr.mxu0 0.0
    %569 = vmatpush1.msra.mxu0 0.0
    %570 = vmatprep.mubr.f32.mxu0 0.0
    %571 = vmatmul.mubr.f32.gmra.mrb[0].mxu0 %v499
    %v572 = vpop.f32.mrb[0].mxu0
    %v573 = vadd.f32 %v504, %v572
    %v574 = vpop.f32.mrb[0].mxu0
    %575 = vdwg.mxu0
    %v576 = vmax.f32 %v573, -1.0
    %v577 = vmin.f32 %v576, 1.0
    %v579 = vlaneseq
    %v580 = vshrl.u32 %v579, 7
    %v581 = vsub.s32 0, %v580
    %v582 = vrot.slane %v168, %v581
    %584 = vmatprep.subr.mxu0 0.0
    %585 = vmatpush1.msra.mxu0 %v149
    %586 = vmatprep.subr.mxu0 0.0
    %587 = vmatpush1.msra.mxu0 %v150
    %588 = vmatprep.subr.mxu0 0.0
    %589 = vmatpush1.msra.mxu0 %v151
    %590 = vmatprep.subr.mxu0 0.0
    %591 = vmatpush1.msra.mxu0 %v152
    %592 = vmatprep.subr.mxu0 0.0
    %593 = vmatpush1.msra.mxu0 %v153
    %594 = vmatprep.subr.mxu0 0.0
    %595 = vmatpush1.msra.mxu0 %v154
    %596 = vmatprep.subr.mxu0 0.0
    %597 = vmatpush1.msra.mxu0 %v155
    %598 = vmatprep.subr.mxu0 0.0
    %599 = vmatpush1.msra.mxu0 %v156
    %600 = vmatprep.subr.mxu0 0.0
    %601 = vmatpush1.msra.mxu0 %v157
    %602 = vmatprep.subr.mxu0 0.0
    %603 = vmatpush1.msra.mxu0 %v158
    %604 = vmatprep.subr.mxu0 0.0
    %605 = vmatpush1.msra.mxu0 %v159
    %606 = vmatprep.subr.mxu0 0.0
    %607 = vmatpush1.msra.mxu0 %v160
    %608 = vmatprep.subr.mxu0 0.0
    %609 = vmatpush1.msra.mxu0 %v161
    %610 = vmatprep.subr.mxu0 0.0
    %611 = vmatpush1.msra.mxu0 %v162
    %612 = vmatprep.subr.mxu0 0.0
    %613 = vmatpush1.msra.mxu0 %v163
    %614 = vmatprep.subr.mxu0 0.0
    %615 = vmatpush1.msra.mxu0 %v164
    %616 = vmatprep.subr.mxu0 0.0
    %617 = vmatpush1.msra.mxu0 0.0
    %618 = vmatprep.subr.mxu0 0.0
    %619 = vmatpush1.msra.mxu0 0.0
    %620 = vmatprep.subr.mxu0 0.0
    %621 = vmatpush1.msra.mxu0 0.0
    %622 = vmatprep.subr.mxu0 0.0
    %623 = vmatpush1.msra.mxu0 0.0
    %624 = vmatprep.subr.mxu0 0.0
    %625 = vmatpush1.msra.mxu0 0.0
    %626 = vmatprep.subr.mxu0 0.0
    %627 = vmatpush1.msra.mxu0 0.0
    %628 = vmatprep.subr.mxu0 0.0
    %629 = vmatpush1.msra.mxu0 0.0
    %630 = vmatprep.subr.mxu0 0.0
    %631 = vmatpush1.msra.mxu0 0.0
    %632 = vmatprep.subr.mxu0 0.0
    %633 = vmatpush1.msra.mxu0 0.0
    %634 = vmatprep.subr.mxu0 0.0
    %635 = vmatpush1.msra.mxu0 0.0
    %636 = vmatprep.subr.mxu0 0.0
    %637 = vmatpush1.msra.mxu0 0.0
    %638 = vmatprep.subr.mxu0 0.0
    %639 = vmatpush1.msra.mxu0 0.0
    %640 = vmatprep.subr.mxu0 0.0
    %641 = vmatpush1.msra.mxu0 0.0
    %642 = vmatprep.subr.mxu0 0.0
    %643 = vmatpush1.msra.mxu0 0.0
    %644 = vmatprep.subr.mxu0 0.0
    %645 = vmatpush1.msra.mxu0 0.0
    %646 = vmatprep.subr.mxu0 0.0
    %647 = vmatpush1.msra.mxu0 0.0
    %648 = vmatprep.mubr.f32.mxu0 0.0
    %649 = vmatmul.mubr.f32.gmra.mrb[0].mxu0 %v577
    %v650 = vpop.f32.mrb[0].mxu0
    %v651 = vadd.f32 %v582, %v650
    %v652 = vpop.f32.mrb[0].mxu0
    %653 = vdwg.mxu0
    %v654 = vlaneseq
    %v655 = vand.u32 %v654, 127
    %vm656 = vcmp.ge.s32.totalorder %v655, 4
    %vm657 = vcmp.lt.s32.totalorder %v655, 8
    %vm658 = vmand %vm656, %vm657
    %v659 = vmax.f32 %v651, 0.0
    %v660 = vand.u32 2147483647, %v651
    %v661 = vsub.f32 0.0, %v660
    %v662 = vmul.f32 %v661, 1.442695
    %v663 = vpow.pop %v662
    %v664 = vadd.f32 %v663, 1.0
    %v665 = vlog2.pop %v664
    %v666 = vmul.f32 %v665, 0.6931472
    %v667 = vmul.f32 -0.5, %v663
    %v668 = vadd.f32 %v667, 1.0
    %v669 = vmul.f32 %v668, %v663
    %v670 = vand.u32 2147483647, %v663
    %vm671 = vcmp.lt.f32.partialorder %v670, 0.0004427343
    %v672 = vsel %vm671, %v669, %v666
    %v673 = vadd.f32 %v659, %v672
    %v674 = vsel %vm658, %v673, %v651
    %675 = vst [vmem:[%s4] sm:$0xff] %v674
    // Predicated region
    $region34: #{policy_network_forward.1} parent=1 // pred_check
      _
    $region35: #{policy_network_forward.1} parent=1 // pred_check_branch
      %677 = sbr.rel (0) target = $region37
    $region36: #{policy_network_forward.1} parent=1 // pred_region
      _
    $region37: #{policy_network_forward.1} parent=1 // pred_fallthru
      _
    // Predicated region
    $region38: #{policy_network_forward.1} parent=1 // pred_check
      _
    $region39: #{policy_network_forward.1} parent=1 // pred_check_branch
      %679 = sbr.rel (0) target = $region41
    $region40: #{policy_network_forward.1} parent=1 // pred_region
      _
    $region41: #{policy_network_forward.1} parent=1 // pred_fallthru
      _
    %680 = vsyncpa [#allocation3], 1
    %681 = vsyncpa [#allocation5], 1
    %682 = vsyncpa [#allocation8], 1

</llo_original>
